<compile_context>
chip_gen: v7x
topology: tpu7x:2x2x1
jax: 0.10.0
libtpu: 0.0.40
codegen_flags: <defaults>
</compile_context>

<pallas_src>
import math
import functools

import jax
import jax.numpy as jnp
from jax.experimental import pallas as pl
from jax.experimental.pallas import tpu as pltpu


def make_positional_encoding(d_model: int, max_len: int = 2048) -> jnp.ndarray:
    """Deterministic sinusoidal PE buffer, shape (max_len, d_model) — parameter setup glue."""
    position = jnp.arange(max_len, dtype=jnp.float32)[:, None]          # (max_len, 1)
    exp_term = jnp.arange(0, d_model, 2, dtype=jnp.float32)             # (d_model/2,)
    div_term = jnp.exp(exp_term * (-math.log(10000.0) / d_model))       # (d_model/2,)
    angles = position * div_term                                        # (max_len, d_model/2)
    pe = jnp.zeros((max_len, d_model), dtype=jnp.float32)
    pe = pe.at[:, 0::2].set(jnp.sin(angles))
    pe = pe.at[:, 1::2].set(jnp.cos(angles))
    return pe


def _round_up(n: int, m: int) -> int:
    return ((n + m - 1) // m) * m


# ----------------------------- kernels ------------------------------------- #

def _pe_add_kernel(x_ref, pe_ref, o_ref):
    """Eval path. Blocks: x/o (B, T) in the flattened (seq*d_model) layout, pe (1, T)."""
    o_ref[...] = (x_ref[...].astype(jnp.float32) + pe_ref[...]).astype(o_ref.dtype)


def _pe_add_dropout_kernel(x_ref, pe_ref, bits_ref, o_ref, *, keep_threshold: int, scale: float):
    """Training path: keep iff uint8 bits < keep_threshold (P(keep) ~= 1-p); survivors * 1/(1-p)."""
    y = x_ref[...].astype(jnp.float32) + pe_ref[...]            # VPU add (free vs HBM)
    keep = bits_ref[...] < jnp.uint8(keep_threshold)            # single integer compare
    o_ref[...] = jnp.where(keep, y * jnp.float32(scale), jnp.float32(0.0)).astype(o_ref.dtype)


# ----------------------------- wrapper ------------------------------------- #

def positional_encoding_forward(x, pe, *, dropout_prob: float = 0.1, training: bool = True,
                                rng_key=None, tile_budget_bytes: int = 4 * 1024 * 1024):
    """x: (B, S, D); pe: (max_len, D) full buffer (not pre-sliced); rng_key for dropout bits."""
    B, S, D = x.shape
    max_len, d_model = pe.shape
    assert d_model == D, "pe d_model must match x"
    assert S <= max_len, "sequence length exceeds positional-encoding max_len"

    total = S * D
    apply_dropout = training and dropout_prob > 0.0

    # Tile the flattened (S*D) axis.  Budget accounts for the SUM of all streams
    # (x read + out write [+ uint8 bits read] per batch row, plus the fp32 pe row).
    per_col = B * (2 * x.dtype.itemsize + (1 if apply_dropout else 0)) + pe.dtype.itemsize
    tile_flat = max(128, (tile_budget_bytes // max(1, per_col)) // 128 * 128)
    tile_flat = min(tile_flat, _round_up(total, 128))            # 128-multiple => lane-dense stores
    n_tiles = pl.cdiv(total, tile_flat)

    x_flat = x.reshape(B, total)                                 # contiguous reshape: free
    pe_flat = pe.reshape(1, max_len * D)                         # contiguous reshape: free
    needed = n_tiles * tile_flat
    if needed > max_len * D:
        # Rare case (S near max_len with a ragged last tile): pad so the padded read of the
        # last block never runs past the PE buffer.
        pe_flat = jnp.pad(pe_flat, ((0, 0), (0, needed - max_len * D)))

    x_spec = pl.BlockSpec((B, tile_flat), lambda t: (0, t))
    pe_spec = pl.BlockSpec((1, tile_flat), lambda t: (0, t))     # pe streamed once total
    out_spec = pl.BlockSpec((B, tile_flat), lambda t: (0, t))
    cparams = pltpu.CompilerParams(dimension_semantics=("parallel",))
    out_shape = jax.ShapeDtypeStruct((B, total), x.dtype)

    if not apply_dropout:
        y_flat = pl.pallas_call(
            _pe_add_kernel,
            out_shape=out_shape,
            grid=(n_tiles,),
            in_specs=[x_spec, pe_spec],
            out_specs=out_spec,
            compiler_params=cparams,
        )(x_flat, pe_flat)
        return y_flat.reshape(B, S, D)

    if rng_key is None:
        rng_key = jax.random.PRNGKey(0)
    # uint8 bits: 1 B/elem of extra HBM traffic instead of 4 B/elem with uint32.
    bits = jax.random.bits(rng_key, (B, total), dtype=jnp.uint8)
    keep_threshold = min(int(round((1.0 - dropout_prob) * 256)), 255)
    scale = 1.0 / (1.0 - dropout_prob)
    kernel = functools.partial(_pe_add_dropout_kernel,
                               keep_threshold=keep_threshold, scale=scale)
    bits_spec = pl.BlockSpec((B, tile_flat), lambda t: (0, t))

    y_flat = pl.pallas_call(
        kernel,
        out_shape=out_shape,
        grid=(n_tiles,),
        in_specs=[x_spec, pe_spec, bits_spec],
        out_specs=out_spec,
        compiler_params=cparams,
    )(x_flat, pe_flat, bits)
    return y_flat.reshape(B, S, D)


# ------------------------------- demo --------------------------------------- #

if __name__ == "__main__":
    B, S, D = 2, 8, 32
    key = jax.random.PRNGKey(0)
    kx, kdrop = jax.random.split(key)
    x = jax.random.normal(kx, (B, S, D), dtype=jnp.float32)
    pe = make_positional_encoding(d_model=D, max_len=2048)

    ref = x + pe[None, :S, :]

    # eval-mode check (dropout disabled => exact reference x + pe)
    y_eval = positional_encoding_forward(x, pe, training=False)
    jax.block_until_ready(y_eval)
    assert y_eval.shape == (B, S, D)
    assert jnp.allclose(y_eval, ref, atol=1e-6), "eval-mode mismatch vs reference"

    # training-mode run (dropout applied inside the kernel)
    p = 0.1
    y_train = positional_encoding_forward(x, pe, dropout_prob=p, training=True, rng_key=kdrop)
    jax.block_until_ready(y_train)
    # each output element must be either 0 (dropped) or (x+pe)/(1-p) (kept & rescaled)
    kept_ok = jnp.abs(y_train - ref / (1.0 - p)) < 1e-4
    dropped_ok = jnp.abs(y_train) < 1e-6
    assert bool(jnp.all(kept_ok | dropped_ok)), "training-mode dropout semantics mismatch"

    print("KERNEL_OK")
</pallas_src>

<mosaic_0001>
module attributes {stable_mosaic.version = 11 : i64} {
  func.func @_pe_add_kernel(%arg0: i32, %arg1: memref<2x256xf32, #tpu.memory_space<vmem>>, %arg2: memref<1x256xf32, #tpu.memory_space<vmem>>, %arg3: memref<2x256xf32, #tpu.memory_space<vmem>>) attributes {dimension_semantics = [#tpu.dimension_semantics<parallel>], iteration_bounds = array<i64: 1>, scalar_prefetch = 0 : i64, scratch_operands = 0 : i64, tpu.core_type = #tpu.core_type<tc>, window_params = [{transform_indices = @transform_0, window_bounds = array<i64: 2, 256>}, {transform_indices = @transform_1, window_bounds = array<i64: 1, 256>}, {transform_indices = @transform_2, window_bounds = array<i64: 2, 256>}]} {
    %c0 = arith.constant 0 : index
    %c0_0 = arith.constant 0 : index
    %0 = vector.load %arg1[%c0, %c0_0] : memref<2x256xf32, #tpu.memory_space<vmem>>, vector<2x256xf32>
    %c0_1 = arith.constant 0 : index
    %c0_2 = arith.constant 0 : index
    %1 = vector.load %arg2[%c0_1, %c0_2] : memref<1x256xf32, #tpu.memory_space<vmem>>, vector<1x256xf32>
    %2 = vector.broadcast %1 : vector<1x256xf32> to vector<2x256xf32>
    %3 = arith.addf %0, %2 : vector<2x256xf32>
    %c0_3 = arith.constant 0 : index
    %c0_4 = arith.constant 0 : index
    %4 = vector.load %arg3[%c0_3, %c0_4] : memref<2x256xf32, #tpu.memory_space<vmem>>, vector<2x256xf32>
    tpu.vector_store %arg3[%c0_3, %c0_4], %3 {strides = array<i32>} : memref<2x256xf32, #tpu.memory_space<vmem>>, vector<2x256xf32>,
    return
  }
  func.func @transform_0(%arg0: i32) -> (i32, i32) {
    %c0_i32 = arith.constant 0 : i32
    %c0_i32_0 = arith.constant 0 : i32
    return %c0_i32, %arg0 : i32, i32
  }
  func.func @transform_1(%arg0: i32) -> (i32, i32) {
    %c0_i32 = arith.constant 0 : i32
    %c0_i32_0 = arith.constant 0 : i32
    return %c0_i32, %arg0 : i32, i32
  }
  func.func @transform_2(%arg0: i32) -> (i32, i32) {
    %c0_i32 = arith.constant 0 : i32
    %c0_i32_0 = arith.constant 0 : i32
    return %c0_i32, %arg0 : i32, i32
  }
}

</mosaic_0001>

<llo_original>
// kernel: tpu_custom_call.1
$region0: #{tpu_custom_call.1}
  #allocation0 [shape = 'u32[]', space=smem, size = 0x4, offset = 0x4, fixed_abs, tag = 'smem constant byte address 0x4 - core index']
  #allocation1 [shape = 'u32[144,128]{1,0:T(1,128)}', space=vmem, size = 0x12000, scoped, tag = 'internal scratch']
  %s0 = inlined_call_operand.hbm [shape: f32[2,256], index: 0, kind: input, shape index: {}]
  %s1 = inlined_call_operand.hbm [shape: f32[1,65536], index: 1, kind: input, shape index: {}]
  %s2 = inlined_call_operand.hbm [shape: f32[2,256], index: 2, kind: output, shape index: {}]
  %s3 = sld [smem:[#allocation0]]
  $region26: #{tpu_custom_call.1} parent=0
    _
  %s5 = ssub.s32 1, %s3
  %s6 = scalar_select 0, %s5, %s3
  $region1: #{tpu_custom_call.1} parent=0
    #allocation2 [shape = 'u8[2048]{0}', space=vmem, size = 0x800, scoped, tag = 'input window, operand 0, single buffered']
    #allocation3 [shape = 's32[1]{0}', space=sflag, size = 0x4, scoped, tag = 'scoped memory for tpu_custom_call.1']
    #allocation4 [shape = 's32[1]{0}', space=sflag, size = 0x4, scoped, tag = 'scoped memory for tpu_custom_call.1']
    #allocation5 [shape = 'u8[1024]{0}', space=vmem, size = 0x400, scoped, tag = 'input window, operand 1, single buffered']
    #allocation6 [shape = 's32[1]{0}', space=sflag, size = 0x4, scoped, tag = 'scoped memory for tpu_custom_call.1']
    #allocation7 [shape = 'u8[2048]{0}', space=vmem, size = 0x800, scoped, tag = 'output window, operand 0, single buffered']
    %7 = vsyncpa [#allocation3], 0
    %8 = vsyncpa [#allocation6], 0
    %9 = vsyncpa [#allocation4], 0
    // Predicated region
    $region2: #{tpu_custom_call.1} parent=1 // pred_check
      _
    $region3: #{tpu_custom_call.1} parent=1 // pred_check_branch
      %11 = sbr.rel (0) target = $region5
    $region4: #{tpu_custom_call.1} parent=1 // pred_region
      %s13 = ssub.s32 64, 64
      %14 = vsyncadd [#allocation3], %s13
      %s16 = sshll.u32 [#allocation2], 4
      %s17 = int_to_ptr.vmem [resolvable:$true] %s16
      %19 = dma.hbm_to_vmem [thread:$0]  %s0, 64, %s17, [#allocation3]
    $region5: #{tpu_custom_call.1} parent=1 // pred_fallthru
      _
    // Predicated region
    $region6: #{tpu_custom_call.1} parent=1 // pred_check
      _
    $region7: #{tpu_custom_call.1} parent=1 // pred_check_branch
      %21 = sbr.rel (0) target = $region9
    $region8: #{tpu_custom_call.1} parent=1 // pred_region
      %s23 = ssub.s32 32, 32
      %24 = vsyncadd [#allocation6], %s23
      %s26 = sshll.u32 [#allocation5], 4
      %s27 = int_to_ptr.vmem [resolvable:$true] %s26
      %29 = dma.hbm_to_vmem [thread:$0]  %s1, 32, %s27, [#allocation6]
    $region9: #{tpu_custom_call.1} parent=1 // pred_fallthru
      _
    // Predicated region
    $region10: #{tpu_custom_call.1} parent=1 // pred_check
      _
    $region11: #{tpu_custom_call.1} parent=1 // pred_check_branch
      %31 = sbr.rel (0) target = $region13
    $region12: #{tpu_custom_call.1} parent=1 // pred_region
      %32 = dma.done [#allocation3], 64
    $region13: #{tpu_custom_call.1} parent=1 // pred_fallthru
      _
    // Predicated region
    $region14: #{tpu_custom_call.1} parent=1 // pred_check
      _
    $region15: #{tpu_custom_call.1} parent=1 // pred_check_branch
      %34 = sbr.rel (0) target = $region17
    $region16: #{tpu_custom_call.1} parent=1 // pred_region
      %35 = dma.done [#allocation6], 32
    $region17: #{tpu_custom_call.1} parent=1 // pred_fallthru
      _
    %v36 = vld [vmem:[#allocation2] sm:$0xf]
    %v37 = vld [vmem:[#allocation5] sm:$0x3]
    %v39 = vlaneseq
    %v40 = vshrl.u32 %v39, 7
    %v41 = vsub.s32 0, %v40
    %v42 = vrot.slane %v37, %v41
    %v43 = vlaneseq
    %v44 = vshrl.u32 %v43, 7
    %v45 = vsub.s32 1, %v44
    %v46 = vrot.slane %v37, %v45
    %v47 = vcombine.low %v42, %v46
    %v49 = vunpack.c.l.s4 1983009808
    %v50 = vunpack.c.0.s8 %v49
    %v51 = vlaneseq
    %v52 = vshrl.u32 %v51, 7
    %v53 = vsub.s32 %v50, %v52
    %v54 = vrot.slane %v47, %v53
    %v56 = vadd.f32 %v36, %v54
    %57 = vst [vmem:[#allocation7] sm:$0xf] %v56
    // Predicated region
    $region18: #{tpu_custom_call.1} parent=1 // pred_check
      _
    $region19: #{tpu_custom_call.1} parent=1 // pred_check_branch
      %59 = sbr.rel (0) target = $region21
    $region20: #{tpu_custom_call.1} parent=1 // pred_region
      %s61 = ssub.s32 64, 64
      %62 = vsyncadd [#allocation4], %s61
      %s64 = sshll.u32 [#allocation7], 4
      %s65 = int_to_ptr.vmem [resolvable:$true] %s64
      %67 = dma.vmem_to_hbm [thread:$0]  %s65, 64, %s2, [#allocation4]
    $region21: #{tpu_custom_call.1} parent=1 // pred_fallthru
      _
    // Predicated region
    $region22: #{tpu_custom_call.1} parent=1 // pred_check
      _
    $region23: #{tpu_custom_call.1} parent=1 // pred_check_branch
      %69 = sbr.rel (0) target = $region25
    $region24: #{tpu_custom_call.1} parent=1 // pred_region
      %70 = dma.done [#allocation4], 64
    $region25: #{tpu_custom_call.1} parent=1 // pred_fallthru
      _
    %71 = vsyncpa [#allocation3], 1
    %72 = vsyncpa [#allocation6], 1
    %73 = vsyncpa [#allocation4], 1

</llo_original>
